<compile_context>
chip_gen: v7x
topology: tpu7x:2x2x1
jax: 0.10.0
libtpu: 0.0.40
codegen_flags: <defaults>
</compile_context>

<pallas_src>
import functools
import math

import jax
import jax.numpy as jnp
from jax import lax
from jax.experimental import pallas as pl
from jax.experimental.pallas import tpu as pltpu


# --------------------------------------------------------------------------- #
# Kernels
# --------------------------------------------------------------------------- #
def _adain_fused_kernel(x_ref, sty_ref, out_ref, *, eps):
    """Single-pass path.  Blocks: x/out (1, TC, HW); sty (1, TC, 2) = [gamma|beta]."""
    x = x_ref[0].astype(jnp.float32)                       # (TC, HW), stats in f32
    mean = jnp.mean(x, axis=-1, keepdims=True)             # (TC, 1)
    d = x - mean                                           # centered (better numerics)
    var = jnp.mean(d * d, axis=-1, keepdims=True)          # biased variance (InstanceNorm2d)
    gamma = sty_ref[0, :, 0:1]                             # (TC, 1) f32
    beta = sty_ref[0, :, 1:2]
    scale = gamma * lax.rsqrt(var + eps)                   # per-channel affine
    offset = beta - scale * mean
    out_ref[0] = (x * scale + offset).astype(out_ref.dtype)


def _adain_stats_kernel(x_ref, sty_ref, so_ref, sum_sc, sq_sc, *, eps, inv_hw):
    """HW-tiled stats pass.  Blocks: x (1, TC, THW); sty/so (1, TC, 2); scratch (TC, 1) f32."""
    k = pl.program_id(2)

    @pl.when(k == 0)
    def _():
        sum_sc[...] = jnp.zeros_like(sum_sc)
        sq_sc[...] = jnp.zeros_like(sq_sc)

    x = x_ref[0].astype(jnp.float32)                       # (TC, THW)
    sum_sc[...] += jnp.sum(x, axis=-1, keepdims=True)
    sq_sc[...] += jnp.sum(x * x, axis=-1, keepdims=True)

    @pl.when(k == pl.num_programs(2) - 1)
    def _():
        mean = sum_sc[...] * inv_hw
        var = jnp.maximum(sq_sc[...] * inv_hw - mean * mean, 0.0)
        gamma = sty_ref[0, :, 0:1]
        beta = sty_ref[0, :, 1:2]
        scale = gamma * lax.rsqrt(var + eps)
        offset = beta - scale * mean
        so_ref[0] = jnp.concatenate([scale, offset], axis=-1)   # (TC, 2)


def _adain_apply_kernel(x_ref, so_ref, out_ref):
    """HW-tiled apply pass: out = x * scale + offset (pure streaming FMA)."""
    scale = so_ref[0, :, 0:1]
    offset = so_ref[0, :, 1:2]
    out_ref[0] = (x_ref[0].astype(jnp.float32) * scale + offset).astype(out_ref.dtype)


# --------------------------------------------------------------------------- #
# Tiling helpers (generation-aware VMEM budgeting)
# --------------------------------------------------------------------------- #
def _physical_vmem_bytes():
    try:
        return int(pltpu.get_tpu_info().vmem_capacity_bytes)
    except Exception:
        return 64 * 1024 * 1024        # conservative: assume v7x per-TC VMEM


def _choose_c_tile(C, HW, itemsize, budget, sub):
    """Largest channel tile whose VMEM cost fits the budget, or None if none does.
    Per-element cost = 4*itemsize (double-buffered x + out tiles at the input
    dtype) + 8 bytes (two live f32 temporaries: x.astype(f32) and centered d)."""
    per_row = HW * (4 * itemsize + 8)
    if C % sub != 0:                                       # full-dim exemption (tiny / odd C)
        return C if C * per_row <= budget else None
    for t in sorted((t for t in range(sub, C + 1, sub) if C % t == 0), reverse=True):
        if t * per_row <= budget:
            return t
    return None


def _split_for_megacore(N, C, tc, sub):
    """If the grid would have a single step (e.g. N==1, tc==C), split the channel
    tile so both v7x TensorCores get work.  Only legal when C is a sublane multiple."""
    if N * (C // tc) >= 2 or C % sub != 0:
        return tc
    cands = [t for t in range(sub, tc, sub) if C % t == 0]
    return max(cands) if cands else tc


def _choose_hw_tile(HW, tc, itemsize, budget):
    """Largest multiple-of-128 divisor of HW whose (tc, thw) tiles fit the budget."""
    per_elem = tc * (4 * itemsize + 8)
    max_thw = budget // per_elem
    best = None
    for t in range(128, HW + 1, 128):
        if HW % t == 0 and t <= max_thw:
            best = t
    return best


# --------------------------------------------------------------------------- #
# Wrapper
# --------------------------------------------------------------------------- #
def adaptive_instance_norm_2d(x, style, w, b, *, eps=1e-5,
                              force_two_pass=False, hw_tile=None):
    """x: (N, C, H, W); style: (N, S); w: (2C, S); b: (2C,)."""
    N, C, H, W = x.shape
    S = style.shape[1]
    HW = H * W
    he_scale = math.sqrt(2.0 / S)      # getLayerNormalizationFactor for nn.Linear(S, 2C)

    # ---- EqualizedLinear hoisted to XLA (done once, not per grid step) ------
    y = (style.astype(jnp.float32) @ w.astype(jnp.float32).T
         + b.astype(jnp.float32)) * he_scale                       # (N, 2C)
    sty = jnp.stack([y[:, :C], y[:, C:]], axis=-1)                 # (N, C, 2): gamma | beta

    x3 = x.reshape(N, C, HW)
    itemsize = jnp.dtype(x.dtype).itemsize
    sub = max(8, 32 // itemsize)                  # sublane packing: f32=8, bf16=16, int8=32

    phys = _physical_vmem_bytes()
    vmem_limit = min((phys * 3) // 4, 96 * 1024 * 1024)   # ~48 MiB v7x, 96 MiB v5e/v6e
    tile_budget = vmem_limit - 4 * 1024 * 1024            # headroom for compiler scratch

    tc = None if force_two_pass else _choose_c_tile(C, HW, itemsize, tile_budget, sub)

    if tc is not None:
        # ---- single-pass path: full HW row per channel tile ------------------
        tc = _split_for_megacore(N, C, tc, sub)
        out3 = pl.pallas_call(
            functools.partial(_adain_fused_kernel, eps=eps),
            out_shape=jax.ShapeDtypeStruct((N, C, HW), x.dtype),
            grid_spec=pltpu.PrefetchScalarGridSpec(
                num_scalar_prefetch=0,
                grid=(N, C // tc),
                in_specs=[
                    pl.BlockSpec((1, tc, HW), lambda n, c: (n, c, 0)),   # x
                    pl.BlockSpec((1, tc, 2), lambda n, c: (n, c, 0)),    # gamma|beta
                ],
                out_specs=pl.BlockSpec((1, tc, HW), lambda n, c: (n, c, 0)),
            ),
            compiler_params=pltpu.CompilerParams(
                dimension_semantics=("parallel", "parallel"),
                vmem_limit_bytes=vmem_limit),
        )(x3, sty)
        return out3.reshape(N, C, H, W)

    # ---- two-pass path: HW too large for VMEM -> HW-tiled stats + apply ------
    tc = sub if C % sub == 0 else C
    thw = hw_tile if hw_tile is not None else _choose_hw_tile(HW, tc, itemsize, tile_budget)
    if thw is None or HW % thw != 0:
        # TODO(synk): huge ragged HW with no multiple-of-128 divisor that fits VMEM;
        # fall back to plain XLA rather than fail to compile.
        xf = x3.astype(jnp.float32)
        mean = xf.mean(axis=-1, keepdims=True)
        var = ((xf - mean) ** 2).mean(axis=-1, keepdims=True)
        outf = sty[..., 0:1] * (xf - mean) * lax.rsqrt(var + eps) + sty[..., 1:2]
        return outf.astype(x.dtype).reshape(N, C, H, W)

    n_hw = HW // thw
    x_spec = pl.BlockSpec((1, tc, thw), lambda n, c, k: (n, c, k))
    sty_spec = pl.BlockSpec((1, tc, 2), lambda n, c, k: (n, c, 0))
    so_spec = pl.BlockSpec((1, tc, 2), lambda n, c, k: (n, c, 0))

    # Pass 1: per-channel scale/offset via streaming sum / sum-sq accumulation.
    scale_offset = pl.pallas_call(
        functools.partial(_adain_stats_kernel, eps=eps, inv_hw=1.0 / HW),
        out_shape=jax.ShapeDtypeStruct((N, C, 2), jnp.float32),
        grid_spec=pltpu.PrefetchScalarGridSpec(
            num_scalar_prefetch=0,
            grid=(N, C // tc, n_hw),
            in_specs=[x_spec, sty_spec],
            out_specs=so_spec,
            scratch_shapes=[pltpu.VMEM((tc, 1), jnp.float32),
                            pltpu.VMEM((tc, 1), jnp.float32)],
        ),
        compiler_params=pltpu.CompilerParams(
            dimension_semantics=("parallel", "parallel", "arbitrary"),
            vmem_limit_bytes=vmem_limit),
    )(x3, sty)

    # Pass 2: streaming per-element FMA.
    out3 = pl.pallas_call(
        _adain_apply_kernel,
        out_shape=jax.ShapeDtypeStruct((N, C, HW), x.dtype),
        grid_spec=pltpu.PrefetchScalarGridSpec(
            num_scalar_prefetch=0,
            grid=(N, C // tc, n_hw),
            in_specs=[x_spec, so_spec],
            out_specs=x_spec,
        ),
        compiler_params=pltpu.CompilerParams(
            dimension_semantics=("parallel", "parallel", "parallel"),
            vmem_limit_bytes=vmem_limit),
    )(x3, scale_offset)

    return out3.reshape(N, C, H, W)


# --------------------------------------------------------------------------- #
# Pure-JAX reference matching the PyTorch forward
# --------------------------------------------------------------------------- #
def _reference(x, style, w, b, *, eps=1e-5):
    N, C, H, W = x.shape
    S = style.shape[1]
    he_scale = math.sqrt(2.0 / S)
    y = (style @ w.T + b) * he_scale                 # (N, 2C)
    gamma = y[:, :C][:, :, None, None]
    beta = y[:, C:][:, :, None, None]
    mean = x.mean(axis=(2, 3), keepdims=True)
    var = ((x - mean) ** 2).mean(axis=(2, 3), keepdims=True)
    return gamma * (x - mean) / jnp.sqrt(var + eps) + beta


if __name__ == "__main__":
    N, C, H, W = 2, 4, 16, 16
    style_dim = 8

    key = jax.random.PRNGKey(0)
    kx, ks, kw = jax.random.split(key, 3)

    x = jax.random.normal(kx, (N, C, H, W), dtype=jnp.float32)
    style = jax.random.normal(ks, (N, style_dim), dtype=jnp.float32)

    # EqualizedLinear params: weight ~ N(0,1) (equalized init), bias = [1]*C + [0]*C
    w = jax.random.normal(kw, (2 * C, style_dim), dtype=jnp.float32)
    b = jnp.concatenate([jnp.ones((C,), jnp.float32),
                         jnp.zeros((C,), jnp.float32)])

    ref = _reference(x, style, w, b)

    # Single-pass (common) path.
    out = jax.block_until_ready(adaptive_instance_norm_2d(x, style, w, b))
    assert out.shape == (N, C, H, W)
    assert jnp.allclose(out, ref, atol=1e-4, rtol=1e-4)

    # Also exercise the large-HW (two-pass, HW-tiled) path at this small shape.
    out2 = jax.block_until_ready(
        adaptive_instance_norm_2d(x, style, w, b, force_two_pass=True, hw_tile=128))
    assert jnp.allclose(out2, ref, atol=1e-4, rtol=1e-4)

    print("KERNEL_OK")
</pallas_src>

<mosaic_0001>
module attributes {stable_mosaic.version = 11 : i64} {
  func.func @_adain_fused_kernel(%arg0: i32, %arg1: i32, %arg2: memref<1x4x256xf32, #tpu.memory_space<vmem>>, %arg3: memref<1x4x2xf32, #tpu.memory_space<vmem>>, %arg4: memref<1x4x256xf32, #tpu.memory_space<vmem>>) attributes {dimension_semantics = [#tpu.dimension_semantics<parallel>, #tpu.dimension_semantics<parallel>], iteration_bounds = array<i64: 2, 1>, scalar_prefetch = 0 : i64, scratch_operands = 0 : i64, tpu.core_type = #tpu.core_type<tc>, window_params = [{transform_indices = @transform_0, window_bounds = array<i64: 1, 4, 256>}, {transform_indices = @transform_1, window_bounds = array<i64: 1, 4, 2>}, {transform_indices = @transform_2, window_bounds = array<i64: 1, 4, 256>}]} {
    %c0 = arith.constant 0 : index
    %c0_0 = arith.constant 0 : index
    %c0_1 = arith.constant 0 : index
    %0 = vector.load %arg2[%c0, %c0_0, %c0_1] : memref<1x4x256xf32, #tpu.memory_space<vmem>>, vector<1x4x256xf32>
    %1 = vector.shape_cast %0 : vector<1x4x256xf32> to vector<4x256xf32>
    %cst = arith.constant dense<0.000000e+00> : vector<4xf32>
    %2 = vector.multi_reduction <add>, %1, %cst [1] : vector<4x256xf32> to vector<4xf32>
    %3 = vector.shape_cast %2 : vector<4xf32> to vector<4x1xf32>
    %cst_2 = arith.constant 2.560000e+02 : f32
    %4 = vector.broadcast %cst_2 : f32 to vector<4x1xf32>
    %5 = arith.divf %3, %4 : vector<4x1xf32>
    %6 = vector.broadcast %5 : vector<4x1xf32> to vector<4x256xf32>
    %7 = arith.subf %1, %6 : vector<4x256xf32>
    %8 = arith.mulf %7, %7 : vector<4x256xf32>
    %cst_3 = arith.constant dense<0.000000e+00> : vector<4xf32>
    %9 = vector.multi_reduction <add>, %8, %cst_3 [1] : vector<4x256xf32> to vector<4xf32>
    %10 = vector.shape_cast %9 : vector<4xf32> to vector<4x1xf32>
    %cst_4 = arith.constant 2.560000e+02 : f32
    %11 = vector.broadcast %cst_4 : f32 to vector<4x1xf32>
    %12 = arith.divf %10, %11 : vector<4x1xf32>
    %c0_5 = arith.constant 0 : index
    %c0_6 = arith.constant 0 : index
    %c0_7 = arith.constant 0 : index
    %13 = vector.load %arg3[%c0_5, %c0_6, %c0_7] : memref<1x4x2xf32, #tpu.memory_space<vmem>>, vector<1x4x1xf32>
    %14 = vector.shape_cast %13 : vector<1x4x1xf32> to vector<4x1xf32>
    %c0_8 = arith.constant 0 : index
    %c0_9 = arith.constant 0 : index
    %c1 = arith.constant 1 : index
    %15 = vector.load %arg3[%c0_8, %c0_9, %c1] : memref<1x4x2xf32, #tpu.memory_space<vmem>>, vector<1x4x1xf32>
    %16 = vector.shape_cast %15 : vector<1x4x1xf32> to vector<4x1xf32>
    %cst_10 = arith.constant 9.99999974E-6 : f32
    %17 = vector.broadcast %cst_10 : f32 to vector<4x1xf32>
    %18 = arith.addf %12, %17 : vector<4x1xf32>
    %19 = math.rsqrt %18 : vector<4x1xf32>
    %20 = arith.mulf %14, %19 : vector<4x1xf32>
    %21 = arith.mulf %20, %5 : vector<4x1xf32>
    %22 = arith.subf %16, %21 : vector<4x1xf32>
    %23 = vector.broadcast %20 : vector<4x1xf32> to vector<4x256xf32>
    %24 = arith.mulf %1, %23 : vector<4x256xf32>
    %25 = vector.broadcast %22 : vector<4x1xf32> to vector<4x256xf32>
    %26 = arith.addf %24, %25 : vector<4x256xf32>
    %c0_11 = arith.constant 0 : index
    %c0_12 = arith.constant 0 : index
    %c0_13 = arith.constant 0 : index
    %27 = vector.load %arg4[%c0_11, %c0_12, %c0_13] : memref<1x4x256xf32, #tpu.memory_space<vmem>>, vector<1x4x256xf32>
    %28 = vector.shape_cast %27 : vector<1x4x256xf32> to vector<4x256xf32>
    %29 = vector.shape_cast %26 : vector<4x256xf32> to vector<1x4x256xf32>
    tpu.vector_store %arg4[%c0_11, %c0_12, %c0_13], %29 {strides = array<i32>} : memref<1x4x256xf32, #tpu.memory_space<vmem>>, vector<1x4x256xf32>,
    return
  }
  func.func @transform_0(%arg0: i32, %arg1: i32) -> (i32, i32, i32) {
    %c0_i32 = arith.constant 0 : i32
    %c0_i32_0 = arith.constant 0 : i32
    return %arg0, %arg1, %c0_i32 : i32, i32, i32
  }
  func.func @transform_1(%arg0: i32, %arg1: i32) -> (i32, i32, i32) {
    %c0_i32 = arith.constant 0 : i32
    %c0_i32_0 = arith.constant 0 : i32
    return %arg0, %arg1, %c0_i32 : i32, i32, i32
  }
  func.func @transform_2(%arg0: i32, %arg1: i32) -> (i32, i32, i32) {
    %c0_i32 = arith.constant 0 : i32
    %c0_i32_0 = arith.constant 0 : i32
    return %arg0, %arg1, %c0_i32 : i32, i32, i32
  }
}

</mosaic_0001>

<llo_original>
// kernel: tpu_custom_call.1
$region0: #{tpu_custom_call.1}
  #allocation0 [shape = 'u32[]', space=smem, size = 0x4, offset = 0x4, fixed_abs, tag = 'smem constant byte address 0x4 - core index']
  #allocation1 [shape = 'u32[144,128]{1,0:T(1,128)}', space=vmem, size = 0x12000, scoped, tag = 'internal scratch']
  %s0 = inlined_call_operand.hbm [shape: f32[2,4,256], index: 0, kind: input, shape index: {}]
  %s1 = inlined_call_operand.vmem [shape: f32[2,4,2], index: 1, kind: input, shape index: {}]
  %s2 = inlined_call_operand.hbm [shape: f32[2,4,256], index: 2, kind: output, shape index: {}]
  %s3 = sld [smem:[#allocation0]]
  $region45: #{tpu_custom_call.1} parent=0
    _
  %s5 = ssub.s32 1, %s3
  %s6 = scalar_select 0, %s5, %s3
  $region1: #{tpu_custom_call.1} parent=0
    #allocation2 [shape = 'u8[8192]{0}', space=vmem, size = 0x2000, scoped, tag = 'input window, operand 0']
    #allocation3 [shape = 's32[2]{0}', space=sflag, size = 0x8, scoped, tag = 'scoped memory for tpu_custom_call.1']
    #allocation4 [shape = 's32[2]{0}', space=sflag, size = 0x8, scoped, tag = 'scoped memory for tpu_custom_call.1']
    #allocation5 [shape = 'u8[8192]{0}', space=vmem, size = 0x2000, scoped, tag = 'output window, operand 0']
    %7 = vsyncpa [#allocation3], 0
    %s8 = scalar_lea.sflag [#allocation3], 1
    %9 = vsyncpa %s8, 0
    %10 = vsyncpa [#allocation4], 0
    %s11 = scalar_lea.sflag [#allocation4], 1
    %12 = vsyncpa %s11, 0
    loop: start=0, step=1, limit=4
    $region2: #{tpu_custom_call.1} parent=1 // loop_pre_header
      _
    $region3: #{tpu_custom_call.1} parent=1 // loop_header
      %s14 = sphi 0, %s18
      %p15 = scmp.ge.s32.totalorder %s14, 4
      %s21 = sphi 0, %s33
      %s22 = sphi 0, %s29
      %s23 = sphi 0, %s21
      %s24 = sphi 0, %s22
      %s25 = sphi 0, %s23
      %s26 = sphi 0, %s24
      %s38 = sphi 0, %s40
      %s41 = sphi 0, %s38
      %s42 = sphi 0, %s41
      %s58 = sphi 0, %s42
      %s66 = sphi 0, %s68
      %s69 = sphi 0, %s66
      %s70 = sphi 0, %s69
      %s86 = sphi 0, %s70
      %s94 = sphi 0, %s96
      %s97 = sphi 0, %s94
      %s98 = sphi 0, %s97
      %s114 = sphi 0, %s98
    $region4: #{tpu_custom_call.1} parent=1 // loop_header_branch
      %17 = sbr.rel (%p15) target = $region8
    $region5: #{tpu_custom_call.1} parent=1 // loop_body
      %s19 = ssub.s32 %s14, 1
      %s20 = ssub.s32 %s14, 2
      %s27 = sadd.s32 1, %s22
      %p28 = scmp.ge.s32.totalorder %s27, 1
      %s29 = scalar_select %p28, 0, %s27
      %s30 = sadd.s32 1, %s21
      %s31 = scalar_select %p28, %s30, %s21
      %p32 = scmp.ge.s32.totalorder %s31, 2
      %s33 = scalar_select %p32, 0, %s31
      %s34 = ssub.s32 %s21, %s33
      %s35 = ssub.s32 %s22, %s29
      %s36 = sor.u32 %s34, %s35
      %p37 = scmp.eq.s32.totalorder %s36, 0
      %s39 = sadd.s32 %s38, 1
      %s40 = scalar_select %p37, %s38, %s39
      %p43 = pneg %p37
      %p44 = scmp.eq.s32.totalorder %s14, 1
      %p45 = por %p43, %p44
      %p46 = scmp.ne.s32.totalorder %s38, %s41
      %p47 = scmp.eq.s32.totalorder %s14, 0
      %p48 = por %p46, %p47
      %p49 = scmp.ne.s32.totalorder %s38, %s41
      %p50 = scmp.eq.s32.totalorder %s19, 1
      %p51 = por %p49, %p50
      %p52 = scmp.ne.s32.totalorder %s41, %s42
      %p53 = scmp.eq.s32.totalorder %s19, 0
      %p54 = por %p52, %p53
      %p55 = scmp.ne.s32.totalorder %s41, %s42
      %p56 = scmp.eq.s32.totalorder %s20, 1
      %p57 = por %p55, %p56
      %p59 = scmp.ne.s32.totalorder %s42, %s58
      %p60 = scmp.eq.s32.totalorder %s20, 0
      %p61 = por %p59, %p60
      %s62 = ssub.s32 %s21, %s33
      %s63 = ssub.s32 %s22, %s29
      %s64 = sor.u32 %s62, %s63
      %p65 = scmp.eq.s32.totalorder %s64, 0
      %s67 = sadd.s32 %s66, 1
      %s68 = scalar_select %p65, %s66, %s67
      %p71 = pneg %p65
      %p72 = scmp.eq.s32.totalorder %s14, 1
      %p73 = por %p71, %p72
      %p74 = scmp.ne.s32.totalorder %s66, %s69
      %p75 = scmp.eq.s32.totalorder %s14, 0
      %p76 = por %p74, %p75
      %p77 = scmp.ne.s32.totalorder %s66, %s69
      %p78 = scmp.eq.s32.totalorder %s19, 1
      %p79 = por %p77, %p78
      %p80 = scmp.ne.s32.totalorder %s69, %s70
      %p81 = scmp.eq.s32.totalorder %s19, 0
      %p82 = por %p80, %p81
      %p83 = scmp.ne.s32.totalorder %s69, %s70
      %p84 = scmp.eq.s32.totalorder %s20, 1
      %p85 = por %p83, %p84
      %p87 = scmp.ne.s32.totalorder %s70, %s86
      %p88 = scmp.eq.s32.totalorder %s20, 0
      %p89 = por %p87, %p88
      %s90 = ssub.s32 %s21, %s33
      %s91 = ssub.s32 %s22, %s29
      %s92 = sor.u32 %s90, %s91
      %p93 = scmp.eq.s32.totalorder %s92, 0
      %s95 = sadd.s32 %s94, 1
      %s96 = scalar_select %p93, %s94, %s95
      %p99 = pneg %p93
      %p100 = scmp.eq.s32.totalorder %s14, 1
      %p101 = por %p99, %p100
      %p102 = scmp.ne.s32.totalorder %s94, %s97
      %p103 = scmp.eq.s32.totalorder %s14, 0
      %p104 = por %p102, %p103
      %p105 = scmp.ne.s32.totalorder %s94, %s97
      %p106 = scmp.eq.s32.totalorder %s19, 1
      %p107 = por %p105, %p106
      %p108 = scmp.ne.s32.totalorder %s97, %s98
      %p109 = scmp.eq.s32.totalorder %s19, 0
      %p110 = por %p108, %p109
      %p111 = scmp.ne.s32.totalorder %s97, %s98
      %p112 = scmp.eq.s32.totalorder %s20, 1
      %p113 = por %p111, %p112
      %p115 = scmp.ne.s32.totalorder %s98, %s114
      %p116 = scmp.eq.s32.totalorder %s20, 0
      %p117 = por %p115, %p116
      %p118 = scmp.le.s32.totalorder 1, %s14
      %p119 = scmp.lt.s32.totalorder %s14, 3
      %p120 = pnand %p118, %p119
      %p121 = pneg %p120
      // Predicated region
      $region9: #{tpu_custom_call.1} parent=5 // pred_check
        _
      $region10: #{tpu_custom_call.1} parent=5 // pred_check_branch
        %123 = sbr.rel (%p120) target = $region12
      $region11: #{tpu_custom_call.1} parent=5 // pred_region
        %s124 = ssub.s32 %s14, 1
      $region12: #{tpu_custom_call.1} parent=5 // pred_fallthru
        _
      %p125 = scmp.lt.s32.totalorder %s14, 2
      // Predicated region
      $region13: #{tpu_custom_call.1} parent=5 // pred_check
        %p126 = pneg %p125
      $region14: #{tpu_custom_call.1} parent=5 // pred_check_branch
        %128 = sbr.rel (%p126) target = $region16
      $region15: #{tpu_custom_call.1} parent=5 // pred_region
        // Predicated region
        $region17: #{tpu_custom_call.1} parent=15 // pred_check
          %p129 = pneg %p48
        $region18: #{tpu_custom_call.1} parent=15 // pred_check_branch
          %131 = sbr.rel (%p129) target = $region20
        $region19: #{tpu_custom_call.1} parent=15 // pred_region
          %s132 = sand.u32 %s38, 1
          %s133 = scalar_lea.sflag [#allocation3], %s132
          %s134 = sand.u32 %s38, 1
          %s135 = smul.addr %s134, 8
          %s136 = scalar_lea.vmem [#allocation2], %s135
          %s138 = ssub.s32 128, 128
          %139 = vsyncadd %s133, %s138
          %s140 = smul.addr %s22, 2
          %s141 = smul.addr %s21, 2
          %s142 = sadd.s32 %s140, %s141
          %s143 = smul.addr %s142, 64
          %s144 = scalar_lea.hbm %s0, %s143
          %s146 = sshll.u32 %s136, 4
          %s147 = int_to_ptr.vmem [resolvable:$true] %s146
          %149 = dma.hbm_to_vmem [thread:$0]  %s144, 128, %s147, %s133
        $region20: #{tpu_custom_call.1} parent=15 // pred_fallthru
          _
        // Predicated region
        $region21: #{tpu_custom_call.1} parent=15 // pred_check
          %p150 = pneg %p76
        $region22: #{tpu_custom_call.1} parent=15 // pred_check_branch
          %152 = sbr.rel (%p150) target = $region24
        $region23: #{tpu_custom_call.1} parent=15 // pred_region
          %p153 = scmp.lt.s32.totalorder %s21, 1
          %s154 = scalar_select %p153, %s21, 1
          %p155 = scmp.lt.s32.totalorder %s22, 0
          %s156 = scalar_select %p155, %s22, 0
          %s157 = sadd.s32 %s156, %s154
          %s158 = smul.addr %s157, 4
          %s159 = scalar_lea.vmem %s1, %s158
        $region24: #{tpu_custom_call.1} parent=15 // pred_fallthru
          _
      $region16: #{tpu_custom_call.1} parent=5 // pred_fallthru
        _
      %p160 = scmp.le.s32.totalorder 1, %s14
      %p161 = scmp.lt.s32.totalorder %s14, 3
      %p162 = pnand %p160, %p161
      %p163 = pneg %p162
      // Predicated region
      $region25: #{tpu_custom_call.1} parent=5 // pred_check
        _
      $region26: #{tpu_custom_call.1} parent=5 // pred_check_branch
        %165 = sbr.rel (%p162) target = $region28
      $region27: #{tpu_custom_call.1} parent=5 // pred_region
        %s166 = ssub.s32 %s14, 1
        %s167 = sand.u32 %s41, 1
        %s168 = scalar_lea.sflag [#allocation3], %s167
        %s169 = sand.u32 %s41, 1
        %s170 = smul.addr %s169, 8
        %s171 = scalar_lea.vmem [#allocation2], %s170
        // Predicated region
        $region29: #{tpu_custom_call.1} parent=27 // pred_check
          %p172 = pneg %p54
        $region30: #{tpu_custom_call.1} parent=27 // pred_check_branch
          %174 = sbr.rel (%p172) target = $region32
        $region31: #{tpu_custom_call.1} parent=27 // pred_region
          %175 = dma.done %s168, 128
        $region32: #{tpu_custom_call.1} parent=27 // pred_fallthru
          _
        %s176 = sand.u32 %s41, 1
        %s177 = scalar_lea.sflag [#allocation3], %s176
        %s178 = sand.u32 %s41, 1
        %s179 = smul.addr %s178, 8
        %s180 = scalar_lea.vmem [#allocation2], %s179
        %p181 = pneg %p54
        %p182 = pneg %p51
        %p183 = scmp.lt.s32.totalorder %s23, 1
        %s184 = scalar_select %p183, %s23, 1
        %p185 = scmp.lt.s32.totalorder %s24, 0
        %s186 = scalar_select %p185, %s24, 0
        %s187 = sadd.s32 %s186, %s184
        %s188 = smul.addr %s187, 4
        %s189 = scalar_lea.vmem %s1, %s188
        %p190 = pneg %p82
        %p191 = pneg %p79
        %p192 = pneg %p110
        %p193 = pneg %p107
        %s194 = sand.u32 %s97, 1
        %s195 = scalar_lea.sflag [#allocation4], %s194
        %s196 = sand.u32 %s97, 1
        %s197 = smul.addr %s196, 8
        %s198 = scalar_lea.vmem [#allocation5], %s197
        %p199 = scmp.lt.s32.totalorder %s23, 1
        %s200 = scalar_select %p199, %s23, 1
        %p201 = scmp.lt.s32.totalorder %s24, 0
        %s202 = scalar_select %p201, %s24, 0
        %s203 = sadd.s32 %s202, %s200
        %s204 = smul.addr %s203, 4
        %s205 = scalar_lea.vmem %s1, %s204
        %v206 = vld [vmem:[%s171] sm:$0xff]
        %v208 = vcombine.high %v206, %v206
        %vm210 = vcmask 1043456
        %v211 = vsel %vm210, %v206, 0.0
        %v212 = vsel %vm210, %v208, 0.0
        %v213 = vadd.f32 %v211, %v212
        %214 = vadd.xlane.f32.xlu0 %v213
        %v215 = vpop.xlane.xlu0 %214
        %v216 = vrcp.pop 256.0
        %v217 = vmul.f32 %v215, %v216
        %v220 = vunpack.c.l.s4 839922192
        %v221 = vunpack.c.0.s8 %v220
        %v222 = vlaneseq
        %v223 = vshrl.u32 %v222, 7
        %v224 = vsub.s32 %v221, %v223
        %v225 = vrot.slane %v217, %v224
        %v227 = vsub.f32 %v206, %v225
        %v228 = vmul.f32 %v227, %v227
        %v230 = vcombine.high %v228, %v228
        %v232 = vsel %vm210, %v228, 0.0
        %v233 = vsel %vm210, %v230, 0.0
        %v234 = vadd.f32 %v232, %v233
        %235 = vadd.xlane.f32.xlu0 %v234
        %v236 = vpop.xlane.xlu0 %235
        %v237 = vmul.f32 %v236, %v216
        %v238 = vld [vmem:[%s205] sm:$0xf]
        %v239 = vadd.f32 %v237, 1e-05
        %v240 = vrsqrt.pop %v239
        %v241 = vmul.f32 %v238, %v240
        %v242 = vmul.f32 %v241, %v217
        %244 = vrot.lane.b32.xlu0 %v242, 1
        %v245 = vpop.permute.xlu0 %244
        %v247 = vsub.f32 %v238, %v245
        %249 = vset.pattern.permute.xlu0 0
        %250 = vperm.xlu0 %249, %v241
        %v251 = vpop.permute.xlu0 %250
        %v253 = vunpack.c.l.s4 839922192
        %v254 = vunpack.c.0.s8 %v253
        %v255 = vlaneseq
        %v256 = vshrl.u32 %v255, 7
        %v257 = vsub.s32 %v254, %v256
        %v258 = vrot.slane %v251, %v257
        %v260 = vmul.f32 %v206, %v258
        %262 = vset.pattern.permute.xlu0 1
        %263 = vperm.xlu0 %262, %v247
        %v264 = vpop.permute.xlu0 %263
        %v266 = vunpack.c.l.s4 839922192
        %v267 = vunpack.c.0.s8 %v266
        %v268 = vlaneseq
        %v269 = vshrl.u32 %v268, 7
        %v270 = vsub.s32 %v267, %v269
        %v271 = vrot.slane %v264, %v270
        %v273 = vadd.f32 %v260, %v271
        %274 = vst [vmem:[%s198] sm:$0xff] %v273
        %s275 = sand.u32 %s97, 1
        %s276 = scalar_lea.sflag [#allocation4], %s275
        %s277 = sand.u32 %s97, 1
        %s278 = smul.addr %s277, 8
        %s279 = scalar_lea.vmem [#allocation5], %s278
        // Predicated region
        $region33: #{tpu_custom_call.1} parent=27 // pred_check
          %p280 = pneg %p107
        $region34: #{tpu_custom_call.1} parent=27 // pred_check_branch
          %282 = sbr.rel (%p280) target = $region36
        $region35: #{tpu_custom_call.1} parent=27 // pred_region
          %s284 = ssub.s32 128, 128
          %285 = vsyncadd %s276, %s284
          %s286 = smul.addr %s24, 2
          %s287 = smul.addr %s23, 2
          %s288 = sadd.s32 %s286, %s287
          %s289 = smul.addr %s288, 64
          %s290 = scalar_lea.hbm %s2, %s289
          %s292 = sshll.u32 %s279, 4
          %s293 = int_to_ptr.vmem [resolvable:$true] %s292
          %295 = dma.vmem_to_hbm [thread:$0]  %s293, 128, %s290, %s276
        $region36: #{tpu_custom_call.1} parent=27 // pred_fallthru
          _
      $region28: #{tpu_custom_call.1} parent=5 // pred_fallthru
        _
      %p296 = scmp.le.s32.totalorder 2, %s14
      // Predicated region
      $region37: #{tpu_custom_call.1} parent=5 // pred_check
        %p297 = pneg %p296
      $region38: #{tpu_custom_call.1} parent=5 // pred_check_branch
        %299 = sbr.rel (%p297) target = $region40
      $region39: #{tpu_custom_call.1} parent=5 // pred_region
        %s300 = ssub.s32 %s14, 2
        // Predicated region
        $region41: #{tpu_custom_call.1} parent=39 // pred_check
          %p301 = pneg %p113
        $region42: #{tpu_custom_call.1} parent=39 // pred_check_branch
          %303 = sbr.rel (%p301) target = $region44
        $region43: #{tpu_custom_call.1} parent=39 // pred_region
          %s304 = sand.u32 %s98, 1
          %s305 = scalar_lea.sflag [#allocation4], %s304
          %s306 = sand.u32 %s98, 1
          %s307 = smul.addr %s306, 8
          %s308 = scalar_lea.vmem [#allocation5], %s307
          %309 = dma.done %s305, 128
        $region44: #{tpu_custom_call.1} parent=39 // pred_fallthru
          _
      $region40: #{tpu_custom_call.1} parent=5 // pred_fallthru
        _
    $region6: #{tpu_custom_call.1} parent=1 // loop_footer
      %s18 = sadd.s32 1, %s14
    $region7: #{tpu_custom_call.1} parent=1 // loop_footer_branch
      %13 = sbr.rel target = $region3
    $region8: #{tpu_custom_call.1} parent=1 // loop_exit
      _
    %310 = vsyncpa [#allocation3], 1
    %s311 = scalar_lea.sflag [#allocation3], 1
    %312 = vsyncpa %s311, 1
    %313 = vsyncpa [#allocation4], 1
    %s314 = scalar_lea.sflag [#allocation4], 1
    %315 = vsyncpa %s314, 1

</llo_original>
